<compile_context>
chip_gen: v7x
topology: tpu7x:2x2x1
jax: 0.10.0
libtpu: 0.0.40
codegen_flags: <defaults>
</compile_context>

<pallas_src>
import jax
import jax.numpy as jnp
from jax import lax
from jax.experimental import pallas as pl
from jax.experimental.pallas import tpu as pltpu  # noqa: F401  (gridless kernel; kept per convention)

K = 5      # Conv1d kernel size
PAD = 2    # Conv1d padding


def _make_kernel(B, L, Le):
    """Build the residual-block kernel with static geometry (B, L, Le) baked in."""

    def kernel(x_ref, p_ref, out_ref):
        # x_ref  : (C, R_in)  zero-separated slab; channels on sublanes, positions
        #                     on lanes. R_in = N2 + 4*PAD, N2 = out lanes (>= B*Le).
        # p_ref  : (C, 2*(K*C+1)) packed params: [w1c | b1 | w2c | b2], with
        #                     w?c[o, k*C + c] = conv_?.weight[o, c, k].
        # out_ref: (C, N2)    column b*Le + l holds output (b, :, l) for l < L.
        C, N2 = out_ref.shape
        N1 = N2 + 2 * PAD
        KC = K * C

        x = x_ref[...]                                          # (C, R_in)

        # Static lane-slices of the single packed parameter operand.
        w1 = p_ref[:, 0:KC]                                     # (C, K*C)
        b1 = p_ref[:, KC:KC + 1]                                # (C, 1)
        w2 = p_ref[:, KC + 1:2 * KC + 1]                        # (C, K*C)
        b2 = p_ref[:, 2 * KC + 1:2 * KC + 2]                    # (C, 1)

        # relu_1 (zero separator columns stay zero, matching PyTorch's
        # relu-then-zero-pad order feeding conv_1).
        h1 = jnp.maximum(x, 0.0)

        # conv_1 as a single im2col matmul: stack the K shifted windows on the
        # sublane axis -> (K*C, N1), then one MXU dot.
        xc1 = jnp.concatenate([h1[:, k:k + N1] for k in range(K)], axis=0)
        a1 = jnp.dot(w1, xc1, preferred_element_type=jnp.float32) + b1   # (C, N1)

        # relu_2, then reproduce conv_2's zero padding with an in-kernel 0/1 mask
        # built from an iota (no extra HBM operand): column i is a real conv_1
        # output iff i in [b*Le + PAD, b*Le + PAD + L) for some batch b.
        col = lax.broadcasted_iota(jnp.int32, (1, N1), 1)
        real = None
        for b in range(B):
            lo = b * Le + PAD
            c = (col >= lo) & (col < lo + L)
            real = c if real is None else (real | c)
        h2 = jnp.where(real, jnp.maximum(a1, 0.0), 0.0)                   # (C, N1)

        # conv_2, same single-matmul im2col.
        xc2 = jnp.concatenate([h2[:, k:k + N2] for k in range(K)], axis=0)
        a2 = jnp.dot(w2, xc2, preferred_element_type=jnp.float32) + b2    # (C, N2)

        # residual: x_0 + 0.3 * conv_2(...); x_0 columns sit at slab offset 2*PAD.
        # Single aligned, lane-dense (multiple-of-128) store.
        out_ref[...] = x[:, 2 * PAD:2 * PAD + N2] + 0.3 * a2

    return kernel


def prepare_params(w1, b1, w2, b2):
    """One-time (per step / at init) packing of conv weights+biases into a single
    kernel operand: [w1c | b1 | w2c | b2] with w?c[o, k*C + c] = w?[o, c, k]."""
    C = w1.shape[0]
    assert w1.shape == (C, C, K) and w2.shape == (C, C, K), \
        "reference module requires d_out == d_in and kernel_size == 5"
    w1c = jnp.transpose(w1, (0, 2, 1)).reshape(C, K * C)
    w2c = jnp.transpose(w2, (0, 2, 1)).reshape(C, K * C)
    return jnp.concatenate(
        [w1c, b1.reshape(C, 1), w2c, b2.reshape(C, 1)], axis=1
    ).astype(jnp.float32)                                       # (C, 2*(K*C+1))


@jax.jit
def residual_block(x_ncl, params):
    """x_ncl: (B, C, L) float32 (PyTorch Conv1d layout). params: prepare_params(...).
    Returns (B, C, L)."""
    B, C, L = x_ncl.shape
    assert x_ncl.dtype == jnp.float32, "kernel is specialized to float32"

    Le = L + 4 * PAD                      # per-batch segment: 2*PAD zeros | L | 2*PAD zeros
    N2 = B * Le                           # real output columns
    N2p = ((N2 + 127) // 128) * 128       # lane-dense (multiple of 128) output width
    R_in = N2p + 4 * PAD                  # input slab columns (tail halo keeps windows in range)

    # Build the channels-on-sublanes slab (fuses into one small XLA copy).
    x_pad = jnp.pad(x_ncl, ((0, 0), (0, 0), (2 * PAD, 2 * PAD)))    # (B, C, Le)
    slab = jnp.transpose(x_pad, (1, 0, 2)).reshape(C, N2)           # (C, B*Le)
    slab = jnp.pad(slab, ((0, 0), (0, R_in - N2)))                  # (C, R_in)

    out_slab = pl.pallas_call(
        _make_kernel(B, L, Le),
        out_shape=jax.ShapeDtypeStruct((C, N2p), jnp.float32),
    )(slab, params)

    # column b*Le + l holds output (b, :, l); drop separator / lane-pad columns.
    out = out_slab[:, :N2].reshape(C, B, Le)[:, :, :L]
    return jnp.transpose(out, (1, 0, 2)).astype(x_ncl.dtype)


def ref_forward(x, w1, b1, w2, b2):
    """Pure-JAX reference of the PyTorch forward (for correctness check)."""
    dn = ("NCH", "OIH", "NCH")
    h = jnp.maximum(x, 0.0)
    c1 = jax.lax.conv_general_dilated(h, w1, (1,), [(PAD, PAD)],
                                      dimension_numbers=dn) + b1[None, :, None]
    h2 = jnp.maximum(c1, 0.0)
    c2 = jax.lax.conv_general_dilated(h2, w2, (1,), [(PAD, PAD)],
                                      dimension_numbers=dn) + b2[None, :, None]
    return x + 0.3 * c2


if __name__ == "__main__":
    # Small shapes consistent with the module: batch=2, d_in=d_out=4, seq_len=16
    B, C, L = 2, 4, 16
    key = jax.random.PRNGKey(0)
    k1, k2, k3, k4, k5 = jax.random.split(key, 5)

    x = jax.random.normal(k1, (B, C, L), jnp.float32)
    w1 = jax.random.normal(k2, (C, C, K), jnp.float32) * 0.1   # Conv1d weight (Cout, Cin, K)
    b1 = jax.random.normal(k3, (C,), jnp.float32) * 0.1
    w2 = jax.random.normal(k4, (C, C, K), jnp.float32) * 0.1
    b2 = jax.random.normal(k5, (C,), jnp.float32) * 0.1

    # Hoisted out of the per-call path: pack weights/biases once.
    params = prepare_params(w1, b1, w2, b2)

    out = residual_block(x, params)
    out = jax.block_until_ready(out)

    expected = ref_forward(x, w1, b1, w2, b2)
    assert out.shape == (B, C, L)
    assert jnp.allclose(out, expected, atol=1e-5, rtol=1e-5)

    print("KERNEL_OK")
</pallas_src>

<mosaic_0001>
module attributes {stable_mosaic.version = 11 : i64} {
  func.func @kernel(%arg0: memref<4x136xf32, #tpu.memory_space<vmem>>, %arg1: memref<4x42xf32, #tpu.memory_space<vmem>>, %arg2: memref<4x128xf32, #tpu.memory_space<vmem>>) attributes {dimension_semantics = [], scalar_prefetch = 0 : i64, scratch_operands = 0 : i64, tpu.core_type = #tpu.core_type<tc>} {
    %c0 = arith.constant 0 : index
    %c0_0 = arith.constant 0 : index
    %0 = vector.load %arg0[%c0, %c0_0] : memref<4x136xf32, #tpu.memory_space<vmem>>, vector<4x136xf32>
    %c0_1 = arith.constant 0 : index
    %c0_2 = arith.constant 0 : index
    %1 = vector.load %arg1[%c0_1, %c0_2] : memref<4x42xf32, #tpu.memory_space<vmem>>, vector<4x20xf32>
    %c0_3 = arith.constant 0 : index
    %c20 = arith.constant 20 : index
    %2 = vector.load %arg1[%c0_3, %c20] : memref<4x42xf32, #tpu.memory_space<vmem>>, vector<4x1xf32>
    %c0_4 = arith.constant 0 : index
    %c21 = arith.constant 21 : index
    %3 = vector.load %arg1[%c0_4, %c21] : memref<4x42xf32, #tpu.memory_space<vmem>>, vector<4x20xf32>
    %c0_5 = arith.constant 0 : index
    %c41 = arith.constant 41 : index
    %4 = vector.load %arg1[%c0_5, %c41] : memref<4x42xf32, #tpu.memory_space<vmem>>, vector<4x1xf32>
    %cst = arith.constant 0.000000e+00 : f32
    %5 = vector.broadcast %cst : f32 to vector<4x136xf32>
    %6 = arith.maximumf %0, %5 : vector<4x136xf32>
    %7 = vector.extract_strided_slice %6 {offsets = [0, 0], sizes = [4, 132], strides = [1, 1]} : vector<4x136xf32> to vector<4x132xf32>
    %8 = vector.extract_strided_slice %6 {offsets = [0, 1], sizes = [4, 132], strides = [1, 1]} : vector<4x136xf32> to vector<4x132xf32>
    %9 = vector.extract_strided_slice %6 {offsets = [0, 2], sizes = [4, 132], strides = [1, 1]} : vector<4x136xf32> to vector<4x132xf32>
    %10 = vector.extract_strided_slice %6 {offsets = [0, 3], sizes = [4, 132], strides = [1, 1]} : vector<4x136xf32> to vector<4x132xf32>
    %11 = vector.extract_strided_slice %6 {offsets = [0, 4], sizes = [4, 132], strides = [1, 1]} : vector<4x136xf32> to vector<4x132xf32>
    %12 = tpu.concatenate %7, %8, %9, %10, %11 in 0 : vector<4x132xf32>, vector<4x132xf32>, vector<4x132xf32>, vector<4x132xf32>, vector<4x132xf32> -> vector<20x132xf32>
    %cst_6 = arith.constant dense<0.000000e+00> : vector<4x132xf32>
    %13 = tpu.matmul %1, %12, %cst_6 {dimension_numbers = #tpu.dot_dimension_numbers<[1], [0], [0], [1], [0, 0, 1, 1], [], []>} : vector<4x20xf32>, vector<20x132xf32>, vector<4x132xf32> -> vector<4x132xf32>
    %14 = vector.broadcast %2 : vector<4x1xf32> to vector<4x132xf32>
    %15 = arith.addf %13, %14 : vector<4x132xf32>
    %16 = tpu.iota {dimensions = array<i32: 1>} : vector<1x132xi32>
    %c2_i32 = arith.constant 2 : i32
    %17 = vector.broadcast %c2_i32 : i32 to vector<1x132xi32>
    %18 = arith.cmpi sge, %16, %17 : vector<1x132xi32>
    %c18_i32 = arith.constant 18 : i32
    %19 = vector.broadcast %c18_i32 : i32 to vector<1x132xi32>
    %20 = arith.cmpi slt, %16, %19 : vector<1x132xi32>
    %21 = arith.andi %18, %20 : vector<1x132xi1>
    %c26_i32 = arith.constant 26 : i32
    %22 = vector.broadcast %c26_i32 : i32 to vector<1x132xi32>
    %23 = arith.cmpi sge, %16, %22 : vector<1x132xi32>
    %c42_i32 = arith.constant 42 : i32
    %24 = vector.broadcast %c42_i32 : i32 to vector<1x132xi32>
    %25 = arith.cmpi slt, %16, %24 : vector<1x132xi32>
    %26 = arith.andi %23, %25 : vector<1x132xi1>
    %27 = arith.ori %21, %26 : vector<1x132xi1>
    %cst_7 = arith.constant 0.000000e+00 : f32
    %28 = vector.broadcast %cst_7 : f32 to vector<4x132xf32>
    %29 = arith.maximumf %15, %28 : vector<4x132xf32>
    %cst_8 = arith.constant 0.000000e+00 : f32
    %30 = vector.shape_cast %27 : vector<1x132xi1> to vector<1x132xi1>
    %31 = vector.broadcast %30 : vector<1x132xi1> to vector<4x132xi1>
    %32 = vector.broadcast %cst_8 : f32 to vector<4x132xf32>
    %33 = arith.select %31, %29, %32 : vector<4x132xi1>, vector<4x132xf32>
    %34 = vector.extract_strided_slice %33 {offsets = [0, 0], sizes = [4, 128], strides = [1, 1]} : vector<4x132xf32> to vector<4x128xf32>
    %35 = vector.extract_strided_slice %33 {offsets = [0, 1], sizes = [4, 128], strides = [1, 1]} : vector<4x132xf32> to vector<4x128xf32>
    %36 = vector.extract_strided_slice %33 {offsets = [0, 2], sizes = [4, 128], strides = [1, 1]} : vector<4x132xf32> to vector<4x128xf32>
    %37 = vector.extract_strided_slice %33 {offsets = [0, 3], sizes = [4, 128], strides = [1, 1]} : vector<4x132xf32> to vector<4x128xf32>
    %38 = vector.extract_strided_slice %33 {offsets = [0, 4], sizes = [4, 128], strides = [1, 1]} : vector<4x132xf32> to vector<4x128xf32>
    %39 = tpu.concatenate %34, %35, %36, %37, %38 in 0 : vector<4x128xf32>, vector<4x128xf32>, vector<4x128xf32>, vector<4x128xf32>, vector<4x128xf32> -> vector<20x128xf32>
    %cst_9 = arith.constant dense<0.000000e+00> : vector<4x128xf32>
    %40 = tpu.matmul %3, %39, %cst_9 {dimension_numbers = #tpu.dot_dimension_numbers<[1], [0], [0], [1], [0, 0, 1, 1], [], []>} : vector<4x20xf32>, vector<20x128xf32>, vector<4x128xf32> -> vector<4x128xf32>
    %41 = vector.broadcast %4 : vector<4x1xf32> to vector<4x128xf32>
    %42 = arith.addf %40, %41 : vector<4x128xf32>
    %43 = vector.extract_strided_slice %0 {offsets = [0, 4], sizes = [4, 128], strides = [1, 1]} : vector<4x136xf32> to vector<4x128xf32>
    %cst_10 = arith.constant 3.000000e-01 : f32
    %44 = vector.broadcast %cst_10 : f32 to vector<4x128xf32>
    %45 = arith.mulf %44, %42 : vector<4x128xf32>
    %46 = arith.addf %43, %45 : vector<4x128xf32>
    %c0_11 = arith.constant 0 : index
    %c0_12 = arith.constant 0 : index
    %47 = vector.load %arg2[%c0_11, %c0_12] : memref<4x128xf32, #tpu.memory_space<vmem>>, vector<4x128xf32>
    tpu.vector_store %arg2[%c0_11, %c0_12], %46 {strides = array<i32>} : memref<4x128xf32, #tpu.memory_space<vmem>>, vector<4x128xf32>,
    return
  }
}

</mosaic_0001>

<llo_original>
// kernel: residual_block.1
$region0: #{residual_block.1}
  #allocation0 [shape = 'u32[]', space=smem, size = 0x4, offset = 0x4, fixed_abs, tag = 'smem constant byte address 0x4 - core index']
  #allocation1 [shape = 'u32[144,128]{1,0:T(1,128)}', space=vmem, size = 0x12000, scoped, tag = 'internal scratch']
  %s0 = inlined_call_operand.vmem [shape: f32[4,136], index: 0, kind: input, shape index: {}]
  %s1 = inlined_call_operand.vmem [shape: f32[4,42], index: 1, kind: input, shape index: {}]
  %s2 = inlined_call_operand.vmem [shape: f32[4,128], index: 2, kind: output, shape index: {}]
  %s3 = sld [smem:[#allocation0]]
  $region18: #{residual_block.1} parent=0
    _
  %s5 = ssub.s32 1, %s3
  %s6 = scalar_select 0, %s5, %s3
  // Predicated region
  $region2: #{residual_block.1} parent=0 // pred_check
    _
  $region3: #{residual_block.1} parent=0 // pred_check_branch
    %8 = sbr.rel (0) target = $region5
  $region4: #{residual_block.1} parent=0 // pred_region
    _
  $region5: #{residual_block.1} parent=0 // pred_fallthru
    _
  // Predicated region
  $region6: #{residual_block.1} parent=0 // pred_check
    _
  $region7: #{residual_block.1} parent=0 // pred_check_branch
    %10 = sbr.rel (0) target = $region9
  $region8: #{residual_block.1} parent=0 // pred_region
    _
  $region9: #{residual_block.1} parent=0 // pred_fallthru
    _
  %v11 = vld [vmem:[%s0] sm:$0xff]
  %v12 = vld [vmem:[%s1] sm:$0xf]
  %v13 = vmax.f32 %v11, 0.0
  %v15 = vcombine.high %v13, %v13
  %v17 = vcombine.low %v13, %v13
  %18 = vrot.lane.b32.xlu0 %v17, 127
  %v19 = vpop.permute.xlu0 %18
  %20 = vrot.lane.b32.xlu0 %v13, 127
  %v21 = vpop.permute.xlu0 %20
  %vm22 = vcmask 1039360
  %v23 = vsel %vm22, %v19, %v21
  %26 = vrot.lane.b32.xlu0 %v13, 126
  %v27 = vpop.permute.xlu0 %26
  %28 = vrot.lane.b32.xlu0 %v15, 126
  %v29 = vpop.permute.xlu0 %28
  %vm30 = vcmask 1031168
  %v31 = vsel %vm30, %v27, %v29
  %34 = vrot.lane.b32.xlu0 %v17, 125
  %v35 = vpop.permute.xlu0 %34
  %36 = vrot.lane.b32.xlu0 %v13, 125
  %v37 = vpop.permute.xlu0 %36
  %vm38 = vcmask 1022976
  %v39 = vsel %vm38, %v35, %v37
  %42 = vrot.lane.b32.xlu0 %v13, 124
  %v43 = vpop.permute.xlu0 %42
  %44 = vrot.lane.b32.xlu0 %v15, 124
  %v45 = vpop.permute.xlu0 %44
  %vm46 = vcmask 1014784
  %v47 = vsel %vm46, %v43, %v45
  %vm48 = vcmask 1043456
  %v49 = vsel %vm48, %v13, %v23
  %v50 = vsel %vm48, %v15, %v21
  %v51 = vsel %vm48, %v31, %v39
  %v52 = vsel %vm48, %v29, %v37
  %54 = vset.pattern.permute.xlu0 20
  %55 = vperm.xlu0 %54, %v12
  %v56 = vpop.permute.xlu0 %55
  %vm58 = vcmask 162816
  %v59 = vsel %vm58, %v12, 0
  %v61 = vsel %vm48, %v47, 0
  %v63 = vsel %vm48, %v45, 0
  %65 = vmatprep.subr.mxu0 %v50
  %66 = vmatpush1.msra.mxu0 %v49
  %67 = vmatprep.subr.mxu0 %v52
  %68 = vmatpush1.msra.mxu0 %v51
  %69 = vmatprep.subr.mxu0 %v63
  %70 = vmatpush1.msra.mxu0 %v61
  %71 = vmatprep.subr.mxu0 0.0
  %72 = vmatpush1.msra.mxu0 0.0
  %73 = vmatprep.subr.mxu0 0.0
  %74 = vmatpush1.msra.mxu0 0.0
  %75 = vmatprep.subr.mxu0 0.0
  %76 = vmatpush1.msra.mxu0 0.0
  %77 = vmatprep.subr.mxu0 0.0
  %78 = vmatpush1.msra.mxu0 0.0
  %79 = vmatprep.subr.mxu0 0.0
  %80 = vmatpush1.msra.mxu0 0.0
  %81 = vmatprep.subr.mxu0 0.0
  %82 = vmatpush1.msra.mxu0 0.0
  %83 = vmatprep.subr.mxu0 0.0
  %84 = vmatpush1.msra.mxu0 0.0
  %85 = vmatprep.subr.mxu0 0.0
  %86 = vmatpush1.msra.mxu0 0.0
  %87 = vmatprep.subr.mxu0 0.0
  %88 = vmatpush1.msra.mxu0 0.0
  %89 = vmatprep.subr.mxu0 0.0
  %90 = vmatpush1.msra.mxu0 0.0
  %91 = vmatprep.subr.mxu0 0.0
  %92 = vmatpush1.msra.mxu0 0.0
  %93 = vmatprep.subr.mxu0 0.0
  %94 = vmatpush1.msra.mxu0 0.0
  %95 = vmatprep.subr.mxu0 0.0
  %96 = vmatpush1.msra.mxu0 0.0
  %97 = vmatprep.subr.mxu0 0.0
  %98 = vmatpush1.msra.mxu0 0.0
  %99 = vmatprep.subr.mxu0 0.0
  %100 = vmatpush1.msra.mxu0 0.0
  %101 = vmatprep.subr.mxu0 0.0
  %102 = vmatpush1.msra.mxu0 0.0
  %103 = vmatprep.subr.mxu0 0.0
  %104 = vmatpush1.msra.mxu0 0.0
  %105 = vmatprep.subr.mxu0 0.0
  %106 = vmatpush1.msra.mxu0 0.0
  %107 = vmatprep.subr.mxu0 0.0
  %108 = vmatpush1.msra.mxu0 0.0
  %109 = vmatprep.subr.mxu0 0.0
  %110 = vmatpush1.msra.mxu0 0.0
  %111 = vmatprep.subr.mxu0 0.0
  %112 = vmatpush1.msra.mxu0 0.0
  %113 = vmatprep.subr.mxu0 0.0
  %114 = vmatpush1.msra.mxu0 0.0
  %115 = vmatprep.subr.mxu0 0.0
  %116 = vmatpush1.msra.mxu0 0.0
  %117 = vmatprep.subr.mxu0 0.0
  %118 = vmatpush1.msra.mxu0 0.0
  %119 = vmatprep.subr.mxu0 0.0
  %120 = vmatpush1.msra.mxu0 0.0
  %121 = vmatprep.subr.mxu0 0.0
  %122 = vmatpush1.msra.mxu0 0.0
  %123 = vmatprep.subr.mxu0 0.0
  %124 = vmatpush1.msra.mxu0 0.0
  %125 = vmatprep.subr.mxu0 0.0
  %126 = vmatpush1.msra.mxu0 0.0
  %127 = vmatprep.subr.mxu0 0.0
  %128 = vmatpush1.msra.mxu0 0.0
  %129 = vmatprep.mubr.f32.mxu0 0.0
  %130 = vmatmul.mubr.f32.gmra.mrb[0].mxu0 %v59
  %v131 = vpop.f32.mrb[0].mxu0
  %v132 = vadd.f32 %v56, %v131
  %v133 = vpop.f32.mrb[0].mxu0
  %v134 = vadd.f32 %v56, %v133
  %135 = vdwg.mxu0
  %v136 = vlaneseq
  %v137 = vand.u32 %v136, 127
  %v138 = vadd.s32 %v137, 128
  %vm139 = vcmp.ge.s32.totalorder %v137, 2
  %vm140 = vcmp.ge.s32.totalorder %v138, 2
  %vm141 = vcmp.lt.s32.totalorder %v137, 18
  %vm142 = vcmp.lt.s32.totalorder %v138, 18
  %vm143 = vmand %vm139, %vm141
  %vm144 = vmand %vm140, %vm142
  %vm145 = vcmp.ge.s32.totalorder %v137, 26
  %vm146 = vcmp.ge.s32.totalorder %v138, 26
  %vm147 = vcmp.lt.s32.totalorder %v137, 42
  %vm148 = vcmp.lt.s32.totalorder %v138, 42
  %vm149 = vmand %vm145, %vm147
  %vm150 = vmand %vm146, %vm148
  %vm151 = vmor %vm143, %vm149
  %vm152 = vmor %vm144, %vm150
  %v153 = vmax.f32 %v132, 0.0
  %v154 = vmax.f32 %v134, 0.0
  %v155 = vsel %vm151, 1, 0
  %v156 = vsel %vm152, 1, 0
  %vm157 = vcmp.eq.s32.totalorder %v155, 1
  %vm158 = vcmp.eq.s32.totalorder %v156, 1
  %v159 = vsel %vm157, %v153, 0.0
  %v160 = vsel %vm158, %v154, 0.0
  %v163 = vrot.slane %v159, 4
  %v164 = vrot.slane %v160, 4
  %165 = vrot.lane.b32.xlu0 %v163, 127
  %v166 = vpop.permute.xlu0 %165
  %167 = vrot.lane.b32.xlu0 %v164, 127
  %v168 = vpop.permute.xlu0 %167
  %v169 = vsel %vm22, %v166, %v168
  %171 = vrot.lane.b32.xlu0 %v159, 126
  %v172 = vpop.permute.xlu0 %171
  %173 = vrot.lane.b32.xlu0 %v160, 126
  %v174 = vpop.permute.xlu0 %173
  %v175 = vsel %vm30, %v172, %v174
  %177 = vrot.lane.b32.xlu0 %v163, 125
  %v178 = vpop.permute.xlu0 %177
  %179 = vrot.lane.b32.xlu0 %v164, 125
  %v180 = vpop.permute.xlu0 %179
  %v181 = vsel %vm38, %v178, %v180
  %183 = vrot.lane.b32.xlu0 %v159, 124
  %v184 = vpop.permute.xlu0 %183
  %185 = vrot.lane.b32.xlu0 %v160, 124
  %v186 = vpop.permute.xlu0 %185
  %v187 = vsel %vm46, %v184, %v186
  %v188 = vsel %vm48, %v159, %v169
  %v189 = vsel %vm48, %v175, %v181
  %190 = vset.pattern.permute.xlu0 41
  %191 = vperm.xlu0 %190, %v12
  %v192 = vpop.permute.xlu0 %191
  %194 = vrot.lane.b32.xlu0 %v12, 107
  %v195 = vpop.permute.xlu0 %194
  %v196 = vsel %vm58, %v195, 0
  %v198 = vsel %vm48, %v187, 0
  %200 = vmatprep.subr.mxu0 0.0
  %201 = vmatpush1.msra.mxu0 %v188
  %202 = vmatprep.subr.mxu0 0.0
  %203 = vmatpush1.msra.mxu0 %v189
  %204 = vmatprep.subr.mxu0 0.0
  %205 = vmatpush1.msra.mxu0 %v198
  %206 = vmatprep.subr.mxu0 0.0
  %207 = vmatpush1.msra.mxu0 0.0
  %208 = vmatprep.subr.mxu0 0.0
  %209 = vmatpush1.msra.mxu0 0.0
  %210 = vmatprep.subr.mxu0 0.0
  %211 = vmatpush1.msra.mxu0 0.0
  %212 = vmatprep.subr.mxu0 0.0
  %213 = vmatpush1.msra.mxu0 0.0
  %214 = vmatprep.subr.mxu0 0.0
  %215 = vmatpush1.msra.mxu0 0.0
  %216 = vmatprep.subr.mxu0 0.0
  %217 = vmatpush1.msra.mxu0 0.0
  %218 = vmatprep.subr.mxu0 0.0
  %219 = vmatpush1.msra.mxu0 0.0
  %220 = vmatprep.subr.mxu0 0.0
  %221 = vmatpush1.msra.mxu0 0.0
  %222 = vmatprep.subr.mxu0 0.0
  %223 = vmatpush1.msra.mxu0 0.0
  %224 = vmatprep.subr.mxu0 0.0
  %225 = vmatpush1.msra.mxu0 0.0
  %226 = vmatprep.subr.mxu0 0.0
  %227 = vmatpush1.msra.mxu0 0.0
  %228 = vmatprep.subr.mxu0 0.0
  %229 = vmatpush1.msra.mxu0 0.0
  %230 = vmatprep.subr.mxu0 0.0
  %231 = vmatpush1.msra.mxu0 0.0
  %232 = vmatprep.subr.mxu0 0.0
  %233 = vmatpush1.msra.mxu0 0.0
  %234 = vmatprep.subr.mxu0 0.0
  %235 = vmatpush1.msra.mxu0 0.0
  %236 = vmatprep.subr.mxu0 0.0
  %237 = vmatpush1.msra.mxu0 0.0
  %238 = vmatprep.subr.mxu0 0.0
  %239 = vmatpush1.msra.mxu0 0.0
  %240 = vmatprep.subr.mxu0 0.0
  %241 = vmatpush1.msra.mxu0 0.0
  %242 = vmatprep.subr.mxu0 0.0
  %243 = vmatpush1.msra.mxu0 0.0
  %244 = vmatprep.subr.mxu0 0.0
  %245 = vmatpush1.msra.mxu0 0.0
  %246 = vmatprep.subr.mxu0 0.0
  %247 = vmatpush1.msra.mxu0 0.0
  %248 = vmatprep.subr.mxu0 0.0
  %249 = vmatpush1.msra.mxu0 0.0
  %250 = vmatprep.subr.mxu0 0.0
  %251 = vmatpush1.msra.mxu0 0.0
  %252 = vmatprep.subr.mxu0 0.0
  %253 = vmatpush1.msra.mxu0 0.0
  %254 = vmatprep.subr.mxu0 0.0
  %255 = vmatpush1.msra.mxu0 0.0
  %256 = vmatprep.subr.mxu0 0.0
  %257 = vmatpush1.msra.mxu0 0.0
  %258 = vmatprep.subr.mxu0 0.0
  %259 = vmatpush1.msra.mxu0 0.0
  %260 = vmatprep.subr.mxu0 0.0
  %261 = vmatpush1.msra.mxu0 0.0
  %262 = vmatprep.subr.mxu0 0.0
  %263 = vmatpush1.msra.mxu0 0.0
  %264 = vmatprep.mubr.f32.mxu0 0.0
  %265 = vmatmul.mubr.f32.gmra.mrb[0].mxu0 %v196
  %v266 = vpop.f32.mrb[0].mxu0
  %v267 = vadd.f32 %v192, %v266
  %v268 = vpop.f32.mrb[0].mxu0
  %269 = vdwg.mxu0
  %v270 = vmul.f32 %v267, 0.3
  %272 = vrot.lane.b32.xlu0 %v270, 4
  %v273 = vpop.permute.xlu0 %272
  %v274 = vrot.slane %v273, 4
  %vm275 = vcmask 31744
  %v276 = vsel %vm275, %v274, %v273
  %v278 = vadd.f32 %v11, %v276
  %v280 = vcombine.high %v278, %v278
  %281 = vrot.lane.b32.xlu0 %v278, 124
  %v282 = vpop.permute.xlu0 %281
  %283 = vrot.lane.b32.xlu0 %v280, 124
  %v284 = vpop.permute.xlu0 %283
  %v285 = vsel %vm46, %v282, %v284
  %287 = vst [vmem:[%s2] sm:$0xf] %v285
  // Predicated region
  $region10: #{residual_block.1} parent=0 // pred_check
    _
  $region11: #{residual_block.1} parent=0 // pred_check_branch
    %289 = sbr.rel (0) target = $region13
  $region12: #{residual_block.1} parent=0 // pred_region
    _
  $region13: #{residual_block.1} parent=0 // pred_fallthru
    _
  // Predicated region
  $region14: #{residual_block.1} parent=0 // pred_check
    _
  $region15: #{residual_block.1} parent=0 // pred_check_branch
    %291 = sbr.rel (0) target = $region17
  $region16: #{residual_block.1} parent=0 // pred_region
    _
  $region17: #{residual_block.1} parent=0 // pred_fallthru
    _

</llo_original>
